<compile_context>
chip_gen: v6e
topology: v6e:2x2x1
jax: 0.10.0
libtpu: 0.0.40
codegen_flags: <defaults>
</compile_context>

<pallas_src>
import jax
import jax.numpy as jnp
from jax.experimental import pallas as pl
from jax.experimental.pallas import tpu as pltpu


def make_twinq_kernel(split_l2: bool, hidden_dim: int):
    """Build the kernel; `split_l2` / `hidden_dim` are static (trace-time)."""
    H = hidden_dim

    def body(sa_ref, w1_ref, b1_ref, w2_refs, b2_ref, w3_ref, b3_ref, out_ref):
        cd = w1_ref.dtype                       # MXU input dtype (bf16)
        sa = sa_ref[...].astype(cd)             # [Din, TB]  (batch in lanes)

        # Layer 1 (both nets fused along the output-feature/sublane axis).
        h = jnp.dot(w1_ref[...], sa, preferred_element_type=jnp.float32)
        h = jnp.maximum(h + b1_ref[...], 0.0)   # [2H, TB] f32

        # Layer 2: fused block-diagonal dot when 2H fits one MXU weight tile,
        # otherwise two independent [H,H] dots (no zero-block streaming).
        if split_l2:
            w2a_ref, w2b_ref = w2_refs
            ha = jnp.dot(w2a_ref[...], h[:H].astype(cd),
                         preferred_element_type=jnp.float32)
            hb = jnp.dot(w2b_ref[...], h[H:].astype(cd),
                         preferred_element_type=jnp.float32)
            h = jnp.concatenate([ha, hb], axis=0)        # [2H, TB]
        else:
            (w2_ref,) = w2_refs
            h = jnp.dot(w2_ref[...], h.astype(cd),
                        preferred_element_type=jnp.float32)
        h = jnp.maximum(h + b2_ref[...], 0.0)   # [2H, TB] f32

        # Layer 3: [8, 2H] x [2H, TB] -> [8, TB]; row 0 = q1, row 1 = q2,
        # rows 2..7 are zero padding (sublane alignment, essentially free).
        q = jnp.dot(w3_ref[...], h.astype(cd), preferred_element_type=jnp.float32)
        q = q + b3_ref[...]                     # [8, TB] f32

        # min over the two q rows -> lane-dense full-width (1, tile_b) store.
        out_ref[...] = jnp.minimum(q[0:1, :], q[1:2, :]).astype(out_ref.dtype)

    if split_l2:
        def kernel(sa_ref, w1_ref, b1_ref, w2a_ref, w2b_ref, b2_ref,
                   w3_ref, b3_ref, out_ref):
            body(sa_ref, w1_ref, b1_ref, (w2a_ref, w2b_ref), b2_ref,
                 w3_ref, b3_ref, out_ref)
    else:
        def kernel(sa_ref, w1_ref, b1_ref, w2_ref, b2_ref,
                   w3_ref, b3_ref, out_ref):
            body(sa_ref, w1_ref, b1_ref, (w2_ref,), b2_ref,
                 w3_ref, b3_ref, out_ref)
    return kernel


def pack_twinq_params(p, compute_dtype=jnp.bfloat16, max_fused_l2_width=256):
    """Fuse + transpose the two Q networks into one packed weight set (once).

    Weights are stored pre-transposed ([out_features, in_features]) so the
    kernel's matmuls stream the tiny weight matrices and keep the batch in
    the lane dimension. Layer-2 twin fusion is only applied when 2H fits one
    MXU weight tile (256 on v6e/v7x; pass 128 when targeting v5e).
    """
    f32 = jnp.float32
    cd = compute_dtype
    Din, H = p["w1a"].shape

    w1_t = jnp.concatenate([p["w1a"], p["w1b"]], axis=1).T          # [2H, Din]
    b1_t = jnp.concatenate([p["b1a"], p["b1b"]], axis=1).T          # [2H, 1]
    b2_t = jnp.concatenate([p["b2a"], p["b2b"]], axis=1).T          # [2H, 1]

    split_l2 = (2 * H) > max_fused_l2_width
    packed = dict(
        hidden_dim=H, split_l2=split_l2,
        w1t=w1_t.astype(cd), b1t=b1_t.astype(f32), b2t=b2_t.astype(f32),
    )
    if split_l2:
        packed["w2at"] = p["w2a"].T.astype(cd)                      # [H, H]
        packed["w2bt"] = p["w2b"].T.astype(cd)                      # [H, H]
    else:
        w2bd = jnp.zeros((2 * H, 2 * H), f32)
        w2bd = w2bd.at[:H, :H].set(p["w2a"].T).at[H:, H:].set(p["w2b"].T)
        packed["w2t"] = w2bd.astype(cd)                             # [2H, 2H]

    # Layer 3: q1 -> row 0 (uses features [0,H)), q2 -> row 1 ([H,2H)).
    w3_t = jnp.zeros((8, 2 * H), f32)
    w3_t = w3_t.at[0, :H].set(p["w3a"][:, 0]).at[1, H:].set(p["w3b"][:, 0])
    b3_t = jnp.zeros((8, 1), f32)
    b3_t = b3_t.at[0, 0].set(p["b3a"][0, 0]).at[1, 0].set(p["b3b"][0, 0])
    packed["w3t"] = w3_t.astype(cd)
    packed["b3t"] = b3_t.astype(f32)
    return packed


def twinq_forward(state, action, packed, *, tile_b=1024):
    """Returns min(q1(s,a), q2(s,a)) with shape [B] (squeeze_output=True)."""
    B, S = state.shape
    A = action.shape[1]
    Din = S + A

    # Batch into lanes: one small wrapper-side concat+transpose so the kernel
    # streams the tiny weights (not the batch) through the MXU.
    sa_t = jnp.concatenate([state, action], axis=1).T               # [Din, B]

    # Batch tile: multiple of 128 (lane alignment), large enough to amortize
    # per-grid-step overhead, but guarantee >= 2 grid steps once B >= 256 so
    # the "parallel" axis can shard across both v7x TensorCores.
    tile_b = max(128, (tile_b // 128) * 128)
    if B >= 256:
        tile_b = min(tile_b, pl.cdiv(pl.cdiv(B, 2), 128) * 128)
    tile_b = min(tile_b, pl.cdiv(B, 128) * 128)
    num_tiles = pl.cdiv(B, tile_b)
    Bp = num_tiles * tile_b
    if Bp != B:                                  # ragged batch -> pad lanes
        sa_t = jnp.pad(sa_t, ((0, 0), (0, Bp - B)))

    def full_spec(arr):
        n = arr.ndim
        return pl.BlockSpec(arr.shape, lambda i: (0,) * n)

    split_l2 = packed["split_l2"]
    if split_l2:
        w_args = (packed["w1t"], packed["b1t"], packed["w2at"], packed["w2bt"],
                  packed["b2t"], packed["w3t"], packed["b3t"])
    else:
        w_args = (packed["w1t"], packed["b1t"], packed["w2t"],
                  packed["b2t"], packed["w3t"], packed["b3t"])

    kernel = make_twinq_kernel(split_l2, packed["hidden_dim"])

    out = pl.pallas_call(
        kernel,
        out_shape=jax.ShapeDtypeStruct((1, Bp), jnp.float32),
        grid_spec=pltpu.PrefetchScalarGridSpec(
            num_scalar_prefetch=0,
            grid=(num_tiles,),
            in_specs=[pl.BlockSpec((Din, tile_b), lambda i: (0, i))]
                     + [full_spec(w) for w in w_args],
            out_specs=pl.BlockSpec((1, tile_b), lambda i: (0, i)),
        ),
        compiler_params=pltpu.CompilerParams(
            dimension_semantics=("parallel",)),
    )(sa_t, *w_args)

    return out.reshape(-1)[:B]                   # squeeze(-1) + drop padding


def init_params(key, state_dim, action_dim, hidden_dim):
    Din = state_dim + action_dim
    keys = jax.random.split(key, 12)

    def lin(kw, kb, fan_in, fan_out):
        # PyTorch-Linear-style uniform init; weights stored as [in, out] (= W.T)
        bound = 1.0 / jnp.sqrt(fan_in)
        w = jax.random.uniform(kw, (fan_in, fan_out), jnp.float32, -bound, bound)
        b = jax.random.uniform(kb, (1, fan_out), jnp.float32, -bound, bound)
        return w, b

    w1a, b1a = lin(keys[0], keys[1], Din, hidden_dim)
    w2a, b2a = lin(keys[2], keys[3], hidden_dim, hidden_dim)
    w3a, b3a = lin(keys[4], keys[5], hidden_dim, 1)
    w1b, b1b = lin(keys[6], keys[7], Din, hidden_dim)
    w2b, b2b = lin(keys[8], keys[9], hidden_dim, hidden_dim)
    w3b, b3b = lin(keys[10], keys[11], hidden_dim, 1)
    return dict(w1a=w1a, b1a=b1a, w2a=w2a, b2a=b2a, w3a=w3a, b3a=b3a,
                w1b=w1b, b1b=b1b, w2b=w2b, b2b=b2b, w3b=w3b, b3b=b3b)


def twinq_ref(state, action, p):
    sa = jnp.concatenate([state, action], axis=1)

    def mlp(w1, b1, w2, b2, w3, b3):
        h = jnp.maximum(sa @ w1 + b1, 0.0)
        h = jnp.maximum(h @ w2 + b2, 0.0)
        return (h @ w3 + b3)[:, 0]

    q1 = mlp(p["w1a"], p["b1a"], p["w2a"], p["b2a"], p["w3a"], p["b3a"])
    q2 = mlp(p["w1b"], p["b1b"], p["w2b"], p["b2b"], p["w3b"], p["b3b"])
    return jnp.minimum(q1, q2)


if __name__ == "__main__":
    state_dim, action_dim, hidden_dim = 16, 16, 32
    batch = 8

    key = jax.random.PRNGKey(0)
    ks, ka, kp = jax.random.split(key, 3)
    state = jax.random.normal(ks, (batch, state_dim), jnp.float32)
    action = jax.random.normal(ka, (batch, action_dim), jnp.float32)
    params = init_params(kp, state_dim, action_dim, hidden_dim)

    ref = twinq_ref(state, action, params)                # f32 reference

    # Path 1: fused block-diagonal layer 2 (2H=64 fits one MXU weight tile).
    packed = pack_twinq_params(params)
    out = jax.block_until_ready(twinq_forward(state, action, packed))
    assert out.shape == (batch,)
    # bf16 matmul inputs (f32 accumulation) -> ~1e-2 relative tolerance.
    assert jnp.allclose(out, ref, atol=2e-2, rtol=2e-2), (out, ref)

    # Path 2: split layer-2 (what a real hidden_dim=512 TwinQ would use);
    # forced at the toy size by lowering the fusion-width threshold.
    packed_split = pack_twinq_params(params, max_fused_l2_width=32)
    assert packed_split["split_l2"]
    out_s = jax.block_until_ready(twinq_forward(state, action, packed_split))
    assert out_s.shape == (batch,)
    assert jnp.allclose(out_s, ref, atol=2e-2, rtol=2e-2), (out_s, ref)

    print("KERNEL_OK")
</pallas_src>

<mosaic_0001>
module attributes {stable_mosaic.version = 11 : i64} {
  func.func @kernel(%arg0: i32, %arg1: memref<32x128xf32, #tpu.memory_space<vmem>>, %arg2: memref<64x32xbf16, #tpu.memory_space<vmem>>, %arg3: memref<64x1xf32, #tpu.memory_space<vmem>>, %arg4: memref<64x64xbf16, #tpu.memory_space<vmem>>, %arg5: memref<64x1xf32, #tpu.memory_space<vmem>>, %arg6: memref<8x64xbf16, #tpu.memory_space<vmem>>, %arg7: memref<8x1xf32, #tpu.memory_space<vmem>>, %arg8: memref<1x128xf32, #tpu.memory_space<vmem>>) attributes {dimension_semantics = [#tpu.dimension_semantics<parallel>], iteration_bounds = array<i64: 1>, scalar_prefetch = 0 : i64, scratch_operands = 0 : i64, tpu.core_type = #tpu.core_type<tc>, window_params = [{transform_indices = @transform_0, window_bounds = array<i64: 32, 128>}, {pipeline_mode = #tpu.pipeline_mode<synchronous>, transform_indices = @transform_1, window_bounds = array<i64: 64, 32>}, {pipeline_mode = #tpu.pipeline_mode<synchronous>, transform_indices = @transform_2, window_bounds = array<i64: 64, 1>}, {pipeline_mode = #tpu.pipeline_mode<synchronous>, transform_indices = @transform_3, window_bounds = array<i64: 64, 64>}, {pipeline_mode = #tpu.pipeline_mode<synchronous>, transform_indices = @transform_4, window_bounds = array<i64: 64, 1>}, {pipeline_mode = #tpu.pipeline_mode<synchronous>, transform_indices = @transform_5, window_bounds = array<i64: 8, 64>}, {pipeline_mode = #tpu.pipeline_mode<synchronous>, transform_indices = @transform_6, window_bounds = array<i64: 8, 1>}, {transform_indices = @transform_7, window_bounds = array<i64: 1, 128>}]} {
    %c0 = arith.constant 0 : index
    %c0_0 = arith.constant 0 : index
    %0 = vector.load %arg1[%c0, %c0_0] : memref<32x128xf32, #tpu.memory_space<vmem>>, vector<32x128xf32>
    %1 = arith.truncf %0 : vector<32x128xf32> to vector<32x128xbf16>
    %c0_1 = arith.constant 0 : index
    %c0_2 = arith.constant 0 : index
    %2 = vector.load %arg2[%c0_1, %c0_2] : memref<64x32xbf16, #tpu.memory_space<vmem>>, vector<64x32xbf16>
    %cst = arith.constant dense<0.000000e+00> : vector<64x128xf32>
    %3 = tpu.matmul %2, %1, %cst {dimension_numbers = #tpu.dot_dimension_numbers<[1], [0], [0], [1], [0, 0, 1, 1], [], []>} : vector<64x32xbf16>, vector<32x128xbf16>, vector<64x128xf32> -> vector<64x128xf32>
    %c0_3 = arith.constant 0 : index
    %c0_4 = arith.constant 0 : index
    %4 = vector.load %arg3[%c0_3, %c0_4] : memref<64x1xf32, #tpu.memory_space<vmem>>, vector<64x1xf32>
    %5 = vector.broadcast %4 : vector<64x1xf32> to vector<64x128xf32>
    %6 = arith.addf %3, %5 : vector<64x128xf32>
    %cst_5 = arith.constant 0.000000e+00 : f32
    %7 = vector.broadcast %cst_5 : f32 to vector<64x128xf32>
    %8 = arith.maximumf %6, %7 : vector<64x128xf32>
    %c0_6 = arith.constant 0 : index
    %c0_7 = arith.constant 0 : index
    %9 = vector.load %arg4[%c0_6, %c0_7] : memref<64x64xbf16, #tpu.memory_space<vmem>>, vector<64x64xbf16>
    %10 = arith.truncf %8 : vector<64x128xf32> to vector<64x128xbf16>
    %cst_8 = arith.constant dense<0.000000e+00> : vector<64x128xf32>
    %11 = tpu.matmul %9, %10, %cst_8 {dimension_numbers = #tpu.dot_dimension_numbers<[1], [0], [0], [1], [0, 0, 1, 1], [], []>} : vector<64x64xbf16>, vector<64x128xbf16>, vector<64x128xf32> -> vector<64x128xf32>
    %c0_9 = arith.constant 0 : index
    %c0_10 = arith.constant 0 : index
    %12 = vector.load %arg5[%c0_9, %c0_10] : memref<64x1xf32, #tpu.memory_space<vmem>>, vector<64x1xf32>
    %13 = vector.broadcast %12 : vector<64x1xf32> to vector<64x128xf32>
    %14 = arith.addf %11, %13 : vector<64x128xf32>
    %cst_11 = arith.constant 0.000000e+00 : f32
    %15 = vector.broadcast %cst_11 : f32 to vector<64x128xf32>
    %16 = arith.maximumf %14, %15 : vector<64x128xf32>
    %c0_12 = arith.constant 0 : index
    %c0_13 = arith.constant 0 : index
    %17 = vector.load %arg6[%c0_12, %c0_13] : memref<8x64xbf16, #tpu.memory_space<vmem>>, vector<8x64xbf16>
    %18 = arith.truncf %16 : vector<64x128xf32> to vector<64x128xbf16>
    %cst_14 = arith.constant dense<0.000000e+00> : vector<8x128xf32>
    %19 = tpu.matmul %17, %18, %cst_14 {dimension_numbers = #tpu.dot_dimension_numbers<[1], [0], [0], [1], [0, 0, 1, 1], [], []>} : vector<8x64xbf16>, vector<64x128xbf16>, vector<8x128xf32> -> vector<8x128xf32>
    %c0_15 = arith.constant 0 : index
    %c0_16 = arith.constant 0 : index
    %20 = vector.load %arg7[%c0_15, %c0_16] : memref<8x1xf32, #tpu.memory_space<vmem>>, vector<8x1xf32>
    %21 = vector.broadcast %20 : vector<8x1xf32> to vector<8x128xf32>
    %22 = arith.addf %19, %21 : vector<8x128xf32>
    %23 = vector.extract_strided_slice %22 {offsets = [0, 0], sizes = [1, 128], strides = [1, 1]} : vector<8x128xf32> to vector<1x128xf32>
    %24 = vector.extract_strided_slice %22 {offsets = [1, 0], sizes = [1, 128], strides = [1, 1]} : vector<8x128xf32> to vector<1x128xf32>
    %25 = arith.minimumf %23, %24 : vector<1x128xf32>
    %c0_17 = arith.constant 0 : index
    %c0_18 = arith.constant 0 : index
    %26 = vector.load %arg8[%c0_17, %c0_18] : memref<1x128xf32, #tpu.memory_space<vmem>>, vector<1x128xf32>
    tpu.vector_store %arg8[%c0_17, %c0_18], %25 {strides = array<i32>} : memref<1x128xf32, #tpu.memory_space<vmem>>, vector<1x128xf32>,
    return
  }
  func.func @transform_0(%arg0: i32) -> (i32, i32) {
    %c0_i32 = arith.constant 0 : i32
    %c0_i32_0 = arith.constant 0 : i32
    return %c0_i32, %arg0 : i32, i32
  }
  func.func @transform_1(%arg0: i32) -> (i32, i32) {
    %c0_i32 = arith.constant 0 : i32
    %c0_i32_0 = arith.constant 0 : i32
    %c0_i32_1 = arith.constant 0 : i32
    return %c0_i32, %c0_i32_0 : i32, i32
  }
  func.func @transform_2(%arg0: i32) -> (i32, i32) {
    %c0_i32 = arith.constant 0 : i32
    %c0_i32_0 = arith.constant 0 : i32
    %c0_i32_1 = arith.constant 0 : i32
    return %c0_i32, %c0_i32_0 : i32, i32
  }
  func.func @transform_3(%arg0: i32) -> (i32, i32) {
    %c0_i32 = arith.constant 0 : i32
    %c0_i32_0 = arith.constant 0 : i32
    %c0_i32_1 = arith.constant 0 : i32
    return %c0_i32, %c0_i32_0 : i32, i32
  }
  func.func @transform_4(%arg0: i32) -> (i32, i32) {
    %c0_i32 = arith.constant 0 : i32
    %c0_i32_0 = arith.constant 0 : i32
    %c0_i32_1 = arith.constant 0 : i32
    return %c0_i32, %c0_i32_0 : i32, i32
  }
  func.func @transform_5(%arg0: i32) -> (i32, i32) {
    %c0_i32 = arith.constant 0 : i32
    %c0_i32_0 = arith.constant 0 : i32
    %c0_i32_1 = arith.constant 0 : i32
    return %c0_i32, %c0_i32_0 : i32, i32
  }
  func.func @transform_6(%arg0: i32) -> (i32, i32) {
    %c0_i32 = arith.constant 0 : i32
    %c0_i32_0 = arith.constant 0 : i32
    %c0_i32_1 = arith.constant 0 : i32
    return %c0_i32, %c0_i32_0 : i32, i32
  }
  func.func @transform_7(%arg0: i32) -> (i32, i32) {
    %c0_i32 = arith.constant 0 : i32
    %c0_i32_0 = arith.constant 0 : i32
    return %c0_i32, %arg0 : i32, i32
  }
}

</mosaic_0001>

<llo_original>
// kernel: tpu_custom_call.1
$region0: #{tpu_custom_call.1}
  #allocation0 [shape = 'u32[]', space=smem, size = 0x4, offset = 0x4, fixed_abs, tag = 'smem constant byte address 0x4 - core index']
  #allocation1 [shape = 'u32[144,128]{1,0:T(1,128)}', space=vmem, size = 0x12000, scoped, tag = 'internal scratch']
  %s0 = inlined_call_operand.vmem [shape: f32[32,128], index: 0, kind: input, shape index: {}]
  %s1 = inlined_call_operand.vmem [shape: bf16[64,32], index: 1, kind: input, shape index: {}]
  %s2 = inlined_call_operand.vmem [shape: f32[64,1], index: 2, kind: input, shape index: {}]
  %s3 = inlined_call_operand.vmem [shape: bf16[64,64], index: 3, kind: input, shape index: {}]
  %s4 = inlined_call_operand.vmem [shape: f32[64,1], index: 4, kind: input, shape index: {}]
  %s5 = inlined_call_operand.vmem [shape: bf16[8,64], index: 5, kind: input, shape index: {}]
  %s6 = inlined_call_operand.vmem [shape: f32[8,1], index: 6, kind: input, shape index: {}]
  %s7 = inlined_call_operand.hbm [shape: f32[1,128], index: 7, kind: output, shape index: {}]
  %s8 = sld [smem:[#allocation0]]
  $region38: #{tpu_custom_call.1} parent=0
    _
  %s10 = ssub.s32 1, %s8
  %s11 = scalar_select 0, %s10, %s8
  $region1: #{tpu_custom_call.1} parent=0
    #allocation2 [shape = 'u8[512]{0}', space=vmem, size = 0x400, scoped, tag = 'output window, operand 0, single buffered']
    #allocation3 [shape = 's32[1]{0}', space=sflag, size = 0x4, scoped, tag = 'scoped memory for tpu_custom_call.1']
    %12 = vsyncpa [#allocation3], 0
    // Predicated region
    $region2: #{tpu_custom_call.1} parent=1 // pred_check
      _
    $region3: #{tpu_custom_call.1} parent=1 // pred_check_branch
      %14 = sbr.rel (0) target = $region5
    $region4: #{tpu_custom_call.1} parent=1 // pred_region
      _
    $region5: #{tpu_custom_call.1} parent=1 // pred_fallthru
      _
    // Predicated region
    $region6: #{tpu_custom_call.1} parent=1 // pred_check
      _
    $region7: #{tpu_custom_call.1} parent=1 // pred_check_branch
      %16 = sbr.rel (0) target = $region9
    $region8: #{tpu_custom_call.1} parent=1 // pred_region
      _
    $region9: #{tpu_custom_call.1} parent=1 // pred_fallthru
      _
    // Predicated region
    $region10: #{tpu_custom_call.1} parent=1 // pred_check
      _
    $region11: #{tpu_custom_call.1} parent=1 // pred_check_branch
      %18 = sbr.rel (0) target = $region13
    $region12: #{tpu_custom_call.1} parent=1 // pred_region
      _
    $region13: #{tpu_custom_call.1} parent=1 // pred_fallthru
      _
    // Predicated region
    $region14: #{tpu_custom_call.1} parent=1 // pred_check
      _
    $region15: #{tpu_custom_call.1} parent=1 // pred_check_branch
      %20 = sbr.rel (0) target = $region17
    $region16: #{tpu_custom_call.1} parent=1 // pred_region
      _
    $region17: #{tpu_custom_call.1} parent=1 // pred_fallthru
      _
    // Predicated region
    $region18: #{tpu_custom_call.1} parent=1 // pred_check
      _
    $region19: #{tpu_custom_call.1} parent=1 // pred_check_branch
      %22 = sbr.rel (0) target = $region21
    $region20: #{tpu_custom_call.1} parent=1 // pred_region
      _
    $region21: #{tpu_custom_call.1} parent=1 // pred_fallthru
      _
    // Predicated region
    $region22: #{tpu_custom_call.1} parent=1 // pred_check
      _
    $region23: #{tpu_custom_call.1} parent=1 // pred_check_branch
      %24 = sbr.rel (0) target = $region25
    $region24: #{tpu_custom_call.1} parent=1 // pred_region
      _
    $region25: #{tpu_custom_call.1} parent=1 // pred_fallthru
      _
    // Predicated region
    $region26: #{tpu_custom_call.1} parent=1 // pred_check
      _
    $region27: #{tpu_custom_call.1} parent=1 // pred_check_branch
      %26 = sbr.rel (0) target = $region29
    $region28: #{tpu_custom_call.1} parent=1 // pred_region
      _
    $region29: #{tpu_custom_call.1} parent=1 // pred_fallthru
      _
    %v28 = vld [vmem:[%s0] sm:$0xff]
    %v29 = vld [vmem:[%s0 + $0x8] sm:$0xff]
    %v30 = vld [vmem:[%s0 + $0x10] sm:$0xff]
    %v31 = vld [vmem:[%s0 + $0x18] sm:$0xff]
    %v32 = vpack.c.bf16 %v29, %v28
    %v33 = vpack.c.bf16 %v31, %v30
    %v34 = vld [vmem:[%s1] sm:$0xf]
    %v35 = vld [vmem:[%s1 + $0x4] sm:$0xf]
    %v36 = vld [vmem:[%s1 + $0x8] sm:$0xf]
    %v37 = vld [vmem:[%s1 + $0xc] sm:$0xf]
    %v38 = vld [vmem:[%s1 + $0x10] sm:$0xf]
    %v39 = vld [vmem:[%s1 + $0x14] sm:$0xf]
    %v40 = vld [vmem:[%s1 + $0x18] sm:$0xf]
    %v41 = vld [vmem:[%s1 + $0x1c] sm:$0xf]
    %v42 = vld [vmem:[%s2] sm:$0xff]
    %v43 = vld [vmem:[%s2 + $0x8] sm:$0xff]
    %v44 = vld [vmem:[%s2 + $0x10] sm:$0xff]
    %v45 = vld [vmem:[%s2 + $0x18] sm:$0xff]
    %v46 = vld [vmem:[%s2 + $0x20] sm:$0xff]
    %v47 = vld [vmem:[%s2 + $0x28] sm:$0xff]
    %v48 = vld [vmem:[%s2 + $0x30] sm:$0xff]
    %v49 = vld [vmem:[%s2 + $0x38] sm:$0xff]
    %51 = vset.pattern.permute.xlu0 0
    %52 = vperm.xlu0 %51, %v42
    %v53 = vpop.permute.xlu0 %52
    %56 = vset.pattern.permute.xlu0 0
    %57 = vperm.xlu0 %56, %v43
    %v58 = vpop.permute.xlu0 %57
    %61 = vset.pattern.permute.xlu0 0
    %62 = vperm.xlu0 %61, %v44
    %v63 = vpop.permute.xlu0 %62
    %66 = vset.pattern.permute.xlu0 0
    %67 = vperm.xlu0 %66, %v45
    %v68 = vpop.permute.xlu0 %67
    %71 = vset.pattern.permute.xlu0 0
    %72 = vperm.xlu0 %71, %v46
    %v73 = vpop.permute.xlu0 %72
    %76 = vset.pattern.permute.xlu0 0
    %77 = vperm.xlu0 %76, %v47
    %v78 = vpop.permute.xlu0 %77
    %81 = vset.pattern.permute.xlu0 0
    %82 = vperm.xlu0 %81, %v48
    %v83 = vpop.permute.xlu0 %82
    %86 = vset.pattern.permute.xlu0 0
    %87 = vperm.xlu0 %86, %v49
    %v88 = vpop.permute.xlu0 %87
    %v98 = vunpack.c.l.b16 %v34
    %v99 = vunpack.c.l.b16 %v35
    %v100 = vunpack.c.l.b16 %v36
    %v101 = vunpack.c.l.b16 %v37
    %v102 = vunpack.c.l.b16 %v38
    %v103 = vunpack.c.l.b16 %v39
    %v104 = vunpack.c.l.b16 %v40
    %v105 = vunpack.c.l.b16 %v41
    %v106 = vpack.c.b16 %v99, %v98
    %v107 = vpack.c.b16 %v101, %v100
    %v108 = vpack.c.b16 %v103, %v102
    %v109 = vpack.c.b16 %v105, %v104
    %vm110 = vcmask 261120
    %v112 = vsel %vm110, %v106, 0
    %v115 = vsel %vm110, %v107, 0
    %v118 = vsel %vm110, %v108, 0
    %v121 = vsel %vm110, %v109, 0
    %123 = vmatprep.subr.bf16.mxu0 0
    %124 = vmatpush1.bf16.msra.mxu0 0
    %125 = vmatprep.subr.bf16.mxu0 0
    %126 = vmatpush1.bf16.msra.mxu0 0
    %127 = vmatprep.subr.bf16.mxu0 0
    %128 = vmatpush1.bf16.msra.mxu0 0
    %129 = vmatprep.subr.bf16.mxu0 0
    %130 = vmatpush1.bf16.msra.mxu0 0
    %131 = vmatprep.subr.bf16.mxu0 0
    %132 = vmatpush1.bf16.msra.mxu0 0
    %133 = vmatprep.subr.bf16.mxu0 0
    %134 = vmatpush1.bf16.msra.mxu0 0
    %135 = vmatprep.subr.bf16.mxu0 0
    %136 = vmatpush1.bf16.msra.mxu0 %v33
    %137 = vmatprep.subr.bf16.mxu0 0
    %138 = vmatpush1.bf16.msra.mxu0 %v32
    %139 = vmatprep.subr.bf16.mxu0 0
    %140 = vmatpush2.bf16.msra.mxu0 0
    %141 = vmatprep.subr.bf16.mxu0 0
    %142 = vmatpush2.bf16.msra.mxu0 0
    %143 = vmatprep.subr.bf16.mxu0 0
    %144 = vmatpush2.bf16.msra.mxu0 0
    %145 = vmatprep.subr.bf16.mxu0 0
    %146 = vmatpush2.bf16.msra.mxu0 0
    %147 = vmatprep.subr.bf16.mxu0 0
    %148 = vmatpush2.bf16.msra.mxu0 0
    %149 = vmatprep.subr.bf16.mxu0 0
    %150 = vmatpush2.bf16.msra.mxu0 0
    %151 = vmatprep.subr.bf16.mxu0 0
    %152 = vmatpush2.bf16.msra.mxu0 0
    %153 = vmatprep.subr.bf16.mxu0 0
    %154 = vmatpush2.bf16.msra.mxu0 0
    %155 = vmatprep.mubr.bf16.mxu0 0
    %156 = vmatmul.mubr.bf16.gmra.mxu0 %v112
    %v157 = vpop.f32.mrf.mxu0
    %v158 = vadd.f32 %v53, %v157
    %v159 = vpop.f32.mrf.mxu0
    %v160 = vpop.f32.mrf.mxu0
    %v161 = vadd.f32 %v58, %v160
    %v162 = vpop.f32.mrf.mxu0
    %163 = vmatprep.mubr.bf16.mxu0 0
    %164 = vmatmul.mubr.bf16.gmra.mxu0 %v115
    %v165 = vpop.f32.mrf.mxu0
    %v166 = vadd.f32 %v63, %v165
    %v167 = vpop.f32.mrf.mxu0
    %v168 = vpop.f32.mrf.mxu0
    %v169 = vadd.f32 %v68, %v168
    %v170 = vpop.f32.mrf.mxu0
    %171 = vmatprep.mubr.bf16.mxu0 0
    %172 = vmatmul.mubr.bf16.gmra.mxu0 %v118
    %v173 = vpop.f32.mrf.mxu0
    %v174 = vadd.f32 %v73, %v173
    %v175 = vpop.f32.mrf.mxu0
    %v176 = vpop.f32.mrf.mxu0
    %v177 = vadd.f32 %v78, %v176
    %v178 = vpop.f32.mrf.mxu0
    %179 = vmatprep.mubr.bf16.mxu0 0
    %180 = vmatmul.mubr.bf16.gmra.mxu0 %v121
    %v181 = vpop.f32.mrf.mxu0
    %v182 = vadd.f32 %v83, %v181
    %v183 = vpop.f32.mrf.mxu0
    %v184 = vpop.f32.mrf.mxu0
    %v185 = vadd.f32 %v88, %v184
    %v186 = vpop.f32.mrf.mxu0
    %187 = vdwg.mxu0
    %v188 = vmax.f32 %v158, 0.0
    %v189 = vmax.f32 %v161, 0.0
    %v190 = vmax.f32 %v166, 0.0
    %v191 = vmax.f32 %v169, 0.0
    %v192 = vmax.f32 %v174, 0.0
    %v193 = vmax.f32 %v177, 0.0
    %v194 = vmax.f32 %v182, 0.0
    %v195 = vmax.f32 %v185, 0.0
    %v196 = vld [vmem:[%s3] sm:$0xf]
    %v197 = vld [vmem:[%s3 + $0x4] sm:$0xf]
    %v198 = vld [vmem:[%s3 + $0x8] sm:$0xf]
    %v199 = vld [vmem:[%s3 + $0xc] sm:$0xf]
    %v200 = vld [vmem:[%s3 + $0x10] sm:$0xf]
    %v201 = vld [vmem:[%s3 + $0x14] sm:$0xf]
    %v202 = vld [vmem:[%s3 + $0x18] sm:$0xf]
    %v203 = vld [vmem:[%s3 + $0x1c] sm:$0xf]
    %v204 = vpack.c.bf16 %v189, %v188
    %v205 = vpack.c.bf16 %v191, %v190
    %v206 = vpack.c.bf16 %v193, %v192
    %v207 = vpack.c.bf16 %v195, %v194
    %v208 = vld [vmem:[%s4] sm:$0xff]
    %v209 = vld [vmem:[%s4 + $0x8] sm:$0xff]
    %v210 = vld [vmem:[%s4 + $0x10] sm:$0xff]
    %v211 = vld [vmem:[%s4 + $0x18] sm:$0xff]
    %v212 = vld [vmem:[%s4 + $0x20] sm:$0xff]
    %v213 = vld [vmem:[%s4 + $0x28] sm:$0xff]
    %v214 = vld [vmem:[%s4 + $0x30] sm:$0xff]
    %v215 = vld [vmem:[%s4 + $0x38] sm:$0xff]
    %217 = vset.pattern.permute.xlu0 0
    %218 = vperm.xlu0 %217, %v208
    %v219 = vpop.permute.xlu0 %218
    %222 = vset.pattern.permute.xlu0 0
    %223 = vperm.xlu0 %222, %v209
    %v224 = vpop.permute.xlu0 %223
    %227 = vset.pattern.permute.xlu0 0
    %228 = vperm.xlu0 %227, %v210
    %v229 = vpop.permute.xlu0 %228
    %232 = vset.pattern.permute.xlu0 0
    %233 = vperm.xlu0 %232, %v211
    %v234 = vpop.permute.xlu0 %233
    %237 = vset.pattern.permute.xlu0 0
    %238 = vperm.xlu0 %237, %v212
    %v239 = vpop.permute.xlu0 %238
    %242 = vset.pattern.permute.xlu0 0
    %243 = vperm.xlu0 %242, %v213
    %v244 = vpop.permute.xlu0 %243
    %247 = vset.pattern.permute.xlu0 0
    %248 = vperm.xlu0 %247, %v214
    %v249 = vpop.permute.xlu0 %248
    %252 = vset.pattern.permute.xlu0 0
    %253 = vperm.xlu0 %252, %v215
    %v254 = vpop.permute.xlu0 %253
    %v264 = vunpack.c.l.b16 %v196
    %v265 = vunpack.c.l.b16 %v197
    %v266 = vunpack.c.l.b16 %v198
    %v267 = vunpack.c.l.b16 %v199
    %v268 = vunpack.c.l.b16 %v200
    %v269 = vunpack.c.l.b16 %v201
    %v270 = vunpack.c.l.b16 %v202
    %v271 = vunpack.c.l.b16 %v203
    %v272 = vpack.c.b16 %v265, %v264
    %v273 = vpack.c.b16 %v267, %v266
    %v274 = vpack.c.b16 %v269, %v268
    %v275 = vpack.c.b16 %v271, %v270
    %vm276 = vcmask 523264
    %v278 = vsel %vm276, %v272, 0
    %v281 = vsel %vm276, %v273, 0
    %v284 = vsel %vm276, %v274, 0
    %v287 = vsel %vm276, %v275, 0
    %289 = vmatprep.subr.bf16.mxu0 0
    %290 = vmatpush1.bf16.msra.mxu0 0
    %291 = vmatprep.subr.bf16.mxu0 0
    %292 = vmatpush1.bf16.msra.mxu0 0
    %293 = vmatprep.subr.bf16.mxu0 0
    %294 = vmatpush1.bf16.msra.mxu0 0
    %295 = vmatprep.subr.bf16.mxu0 0
    %296 = vmatpush1.bf16.msra.mxu0 0
    %297 = vmatprep.subr.bf16.mxu0 0
    %298 = vmatpush1.bf16.msra.mxu0 %v207
    %299 = vmatprep.subr.bf16.mxu0 0
    %300 = vmatpush1.bf16.msra.mxu0 %v206
    %301 = vmatprep.subr.bf16.mxu0 0
    %302 = vmatpush1.bf16.msra.mxu0 %v205
    %303 = vmatprep.subr.bf16.mxu0 0
    %304 = vmatpush1.bf16.msra.mxu0 %v204
    %305 = vmatprep.subr.bf16.mxu0 0
    %306 = vmatpush2.bf16.msra.mxu0 0
    %307 = vmatprep.subr.bf16.mxu0 0
    %308 = vmatpush2.bf16.msra.mxu0 0
    %309 = vmatprep.subr.bf16.mxu0 0
    %310 = vmatpush2.bf16.msra.mxu0 0
    %311 = vmatprep.subr.bf16.mxu0 0
    %312 = vmatpush2.bf16.msra.mxu0 0
    %313 = vmatprep.subr.bf16.mxu0 0
    %314 = vmatpush2.bf16.msra.mxu0 0
    %315 = vmatprep.subr.bf16.mxu0 0
    %316 = vmatpush2.bf16.msra.mxu0 0
    %317 = vmatprep.subr.bf16.mxu0 0
    %318 = vmatpush2.bf16.msra.mxu0 0
    %319 = vmatprep.subr.bf16.mxu0 0
    %320 = vmatpush2.bf16.msra.mxu0 0
    %321 = vmatprep.mubr.bf16.mxu0 0
    %322 = vmatmul.mubr.bf16.gmra.mxu0 %v278
    %v323 = vpop.f32.mrf.mxu0
    %v324 = vadd.f32 %v219, %v323
    %v325 = vpop.f32.mrf.mxu0
    %v326 = vpop.f32.mrf.mxu0
    %v327 = vadd.f32 %v224, %v326
    %v328 = vpop.f32.mrf.mxu0
    %329 = vmatprep.mubr.bf16.mxu0 0
    %330 = vmatmul.mubr.bf16.gmra.mxu0 %v281
    %v331 = vpop.f32.mrf.mxu0
    %v332 = vadd.f32 %v229, %v331
    %v333 = vpop.f32.mrf.mxu0
    %v334 = vpop.f32.mrf.mxu0
    %v335 = vadd.f32 %v234, %v334
    %v336 = vpop.f32.mrf.mxu0
    %337 = vmatprep.mubr.bf16.mxu0 0
    %338 = vmatmul.mubr.bf16.gmra.mxu0 %v284
    %v339 = vpop.f32.mrf.mxu0
    %v340 = vadd.f32 %v239, %v339
    %v341 = vpop.f32.mrf.mxu0
    %v342 = vpop.f32.mrf.mxu0
    %v343 = vadd.f32 %v244, %v342
    %v344 = vpop.f32.mrf.mxu0
    %345 = vmatprep.mubr.bf16.mxu0 0
    %346 = vmatmul.mubr.bf16.gmra.mxu0 %v287
    %v347 = vpop.f32.mrf.mxu0
    %v348 = vadd.f32 %v249, %v347
    %v349 = vpop.f32.mrf.mxu0
    %v350 = vpop.f32.mrf.mxu0
    %v351 = vadd.f32 %v254, %v350
    %v352 = vpop.f32.mrf.mxu0
    %353 = vdwg.mxu0
    %v354 = vmax.f32 %v324, 0.0
    %v355 = vmax.f32 %v327, 0.0
    %v356 = vmax.f32 %v332, 0.0
    %v357 = vmax.f32 %v335, 0.0
    %v358 = vmax.f32 %v340, 0.0
    %v359 = vmax.f32 %v343, 0.0
    %v360 = vmax.f32 %v348, 0.0
    %v361 = vmax.f32 %v351, 0.0
    %v362 = vld [vmem:[%s5] sm:$0xf]
    %v363 = vpack.c.bf16 %v355, %v354
    %v364 = vpack.c.bf16 %v357, %v356
    %v365 = vpack.c.bf16 %v359, %v358
    %v366 = vpack.c.bf16 %v361, %v360
    %v367 = vld [vmem:[%s6] sm:$0xff]
    %369 = vset.pattern.permute.xlu0 0
    %370 = vperm.xlu0 %369, %v367
    %v371 = vpop.permute.xlu0 %370
    %v374 = vsel %vm276, %v362, 0
    %376 = vmatprep.subr.bf16.mxu0 0
    %377 = vmatpush1.bf16.msra.mxu0 0
    %378 = vmatprep.subr.bf16.mxu0 0
    %379 = vmatpush1.bf16.msra.mxu0 0
    %380 = vmatprep.subr.bf16.mxu0 0
    %381 = vmatpush1.bf16.msra.mxu0 0
    %382 = vmatprep.subr.bf16.mxu0 0
    %383 = vmatpush1.bf16.msra.mxu0 0
    %384 = vmatprep.subr.bf16.mxu0 0
    %385 = vmatpush1.bf16.msra.mxu0 %v366
    %386 = vmatprep.subr.bf16.mxu0 0
    %387 = vmatpush1.bf16.msra.mxu0 %v365
    %388 = vmatprep.subr.bf16.mxu0 0
    %389 = vmatpush1.bf16.msra.mxu0 %v364
    %390 = vmatprep.subr.bf16.mxu0 0
    %391 = vmatpush1.bf16.msra.mxu0 %v363
    %392 = vmatprep.subr.bf16.mxu0 0
    %393 = vmatpush2.bf16.msra.mxu0 0
    %394 = vmatprep.subr.bf16.mxu0 0
    %395 = vmatpush2.bf16.msra.mxu0 0
    %396 = vmatprep.subr.bf16.mxu0 0
    %397 = vmatpush2.bf16.msra.mxu0 0
    %398 = vmatprep.subr.bf16.mxu0 0
    %399 = vmatpush2.bf16.msra.mxu0 0
    %400 = vmatprep.subr.bf16.mxu0 0
    %401 = vmatpush2.bf16.msra.mxu0 0
    %402 = vmatprep.subr.bf16.mxu0 0
    %403 = vmatpush2.bf16.msra.mxu0 0
    %404 = vmatprep.subr.bf16.mxu0 0
    %405 = vmatpush2.bf16.msra.mxu0 0
    %406 = vmatprep.subr.bf16.mxu0 0
    %407 = vmatpush2.bf16.msra.mxu0 0
    %408 = vmatprep.mubr.bf16.mxu0 0
    %409 = vmatmul.mubr.bf16.gmra.mxu0 %v374
    %v410 = vpop.f32.mrf.mxu0
    %v411 = vadd.f32 %v371, %v410
    %v412 = vpop.f32.mrf.mxu0
    %v413 = vpop.f32.mrf.mxu0
    %v414 = vpop.f32.mrf.mxu0
    %415 = vdwg.mxu0
    %v417 = vrot.slane %v411, 1
    %v419 = vmin.f32 %v411, %v417
    %420 = vst [vmem:[#allocation2] sm:$0x1] %v419
    // Predicated region
    $region30: #{tpu_custom_call.1} parent=1 // pred_check
      _
    $region31: #{tpu_custom_call.1} parent=1 // pred_check_branch
      %422 = sbr.rel (0) target = $region33
    $region32: #{tpu_custom_call.1} parent=1 // pred_region
      %s424 = ssub.s32 16, 16
      %425 = vsyncadd [#allocation3], %s424
      %s427 = sshll.u32 [#allocation2], 4
      %s428 = int_to_ptr.vmem [resolvable:$true] %s427
      %430 = dma.vmem_to_hbm [thread:$0]  %s428, 16, %s7, [#allocation3]
    $region33: #{tpu_custom_call.1} parent=1 // pred_fallthru
      _
    // Predicated region
    $region34: #{tpu_custom_call.1} parent=1 // pred_check
      _
    $region35: #{tpu_custom_call.1} parent=1 // pred_check_branch
      %432 = sbr.rel (0) target = $region37
    $region36: #{tpu_custom_call.1} parent=1 // pred_region
      %433 = dma.done [#allocation3], 16
    $region37: #{tpu_custom_call.1} parent=1 // pred_fallthru
      _
    %434 = vsyncpa [#allocation3], 1

</llo_original>
